<compile_context>
chip_gen: v7x
topology: tpu7x:2x2x1
jax: 0.10.0
libtpu: 0.0.40
codegen_flags: <defaults>
</compile_context>

<pallas_src>
import functools

import jax
import jax.numpy as jnp
import numpy as np
from jax.experimental import pallas as pl
from jax.experimental.pallas import tpu as pltpu


# ----------------------------------------------------------------------------
# Plain-JAX parameter setup (weight-only)
# ----------------------------------------------------------------------------
def entmax15(weight):
    """Exact Entmax-1.5 along the last axis (sort-based algorithm)."""
    # TODO(synk): the sort/cumsum threshold search has no Mosaic lowering
    # (lax.sort unsupported in-kernel); it is weight-only so it stays in XLA.
    x = weight / 2.0
    x = x - jnp.max(x, axis=-1, keepdims=True)
    xs = -jnp.sort(-x, axis=-1)                              # descending
    d = x.shape[-1]
    rho = jnp.arange(1, d + 1, dtype=x.dtype)
    mean = jnp.cumsum(xs, axis=-1) / rho
    mean_sq = jnp.cumsum(xs * xs, axis=-1) / rho
    ss = rho * (mean_sq - mean * mean)
    delta = (1.0 - ss) / rho
    tau = mean - jnp.sqrt(jnp.maximum(delta, 0.0))
    support_size = jnp.sum((tau <= xs).astype(jnp.int32), axis=-1, keepdims=True)
    tau_star = jnp.take_along_axis(tau, support_size - 1, axis=-1)
    return jnp.square(jnp.maximum(x - tau_star, 0.0))        # (k, D): rows sum to 1


def fold_abstract_layer(ll_w, conv_w, conv_b, gamma, beta, mean, var,
                        *, k, d_out, eps=1e-5):
    """Fold entmax mask + eval-mode BN into the grouped-conv weights.

    Returns W_sig (D_in, k*d_out), W_lin (D_in, k*d_out), b_sig, b_lin (1, k*d_out)
    so the per-group GLU pre-activations are plain dense matmuls on x.
    """
    d_in = ll_w.shape[1]
    mask = entmax15(ll_w)                                     # (k, d_in)
    W = conv_w.reshape(k, 2 * d_out, d_in) * mask[:, None, :]        # fold locality mask
    s = gamma / jnp.sqrt(var + eps)                                   # BN scale (2*k*d_out,)
    Wf = W * s.reshape(k, 2 * d_out, 1)
    bf = (s * (conv_b - mean) + beta).reshape(k, 2 * d_out)
    W_sig = Wf[:, :d_out, :].reshape(k * d_out, d_in).T               # (d_in, k*d_out)
    W_lin = Wf[:, d_out:, :].reshape(k * d_out, d_in).T
    b_sig = bf[:, :d_out].reshape(1, k * d_out)
    b_lin = bf[:, d_out:].reshape(1, k * d_out)
    return W_sig, W_lin, b_sig, b_lin


def _round_up(v, m):
    return ((v + m - 1) // m) * m


# ----------------------------------------------------------------------------
# Kernel bodies
# ----------------------------------------------------------------------------
def _glu(h, ws_ref, wl_ref, bs_ref, bl_ref):
    """relu(sigmoid(h@Ws + bs) * (h@Wl + bl)) for all groups at once."""
    a = jnp.dot(h, ws_ref[...], preferred_element_type=jnp.float32) + bs_ref[...]
    c = jnp.dot(h, wl_ref[...], preferred_element_type=jnp.float32) + bl_ref[...]
    sig = pl.reciprocal(1.0 + jnp.exp(-a), approx=True)      # EUP: exp + approx recip
    return jnp.maximum(sig * c, 0.0)


def _basic_block_kernel_shared(x_ref,
                               wcs_ref, wcl_ref, bcs_ref, bcl_ref,
                               w2s_ref, w2l_ref, b2s_ref, b2l_ref,
                               s2_ref, spad_ref, o_ref, *, slope):
    """pre_out is x: x is read once; layers 1 & 3 share one fat matmul pair."""
    x = x_ref[...].astype(jnp.float32)
    # layers 1 & 3 fused along N: g13[:, :k*d1] = gated_1, g13[:, k*d1:] = gated_3
    g13 = _glu(x, wcs_ref, wcl_ref, bcs_ref, bcl_ref)                 # (tb, k*(d1+d2))
    # layer 2: s1 group-sum already folded into w2 (zero rows cover the g3 part)
    g2 = _glu(g13, w2s_ref, w2l_ref, b2s_ref, b2l_ref)                # (tb, k*d2)
    # group-sums: gated_2 @ s2 + gated_3 @ s2 (spad zero-pads the gated_1 rows)
    y = (jnp.dot(g2, s2_ref[...], preferred_element_type=jnp.float32)
         + jnp.dot(g13, spad_ref[...], preferred_element_type=jnp.float32))
    o_ref[...] = jnp.maximum(y, slope * y).astype(o_ref.dtype)        # leaky_relu


def _basic_block_kernel_split(pre_ref, x_ref,
                              w1s_ref, w1l_ref, b1s_ref, b1l_ref,
                              w2s_ref, w2l_ref, b2s_ref, b2l_ref,
                              w3s_ref, w3l_ref, b3s_ref, b3l_ref,
                              s2_ref, o_ref, *, slope):
    """General case (pre_out != x), still with s1 folded + merged final group-sum."""
    pre = pre_ref[...].astype(jnp.float32)
    x = x_ref[...].astype(jnp.float32)
    g1 = _glu(pre, w1s_ref, w1l_ref, b1s_ref, b1l_ref)                # (tb, k*d1)
    g2 = _glu(g1, w2s_ref, w2l_ref, b2s_ref, b2l_ref)                 # (tb, k*d2)
    g3 = _glu(x, w3s_ref, w3l_ref, b3s_ref, b3l_ref)                  # (tb, k*d2)
    y = jnp.dot(g2 + g3, s2_ref[...], preferred_element_type=jnp.float32)
    o_ref[...] = jnp.maximum(y, slope * y).astype(o_ref.dtype)


# ----------------------------------------------------------------------------
# Wrapper
# ----------------------------------------------------------------------------
def basic_block_forward(x, params, pre_out=None, *, block_b=2048, slope=0.01,
                        io_dtype=jnp.bfloat16):
    """x: (B, fix_input_dim); pre_out: (B, input_dim) or None -> (B, base_outdim)."""
    shared = (pre_out is None) or (pre_out is x)
    if pre_out is None:
        pre_out = x
    orig_dtype = x.dtype
    B = x.shape[0]
    k = params["k"]
    d1 = params["base_outdim"] // 2
    d2 = params["base_outdim"]
    d_pre = pre_out.shape[1]
    d_fix = x.shape[1]

    # --- weight-only setup (entmax + eval-BN folding), all fp32 -------------
    w1s, w1l, b1s, b1l = fold_abstract_layer(*params["conv1"], k=k, d_out=d1)
    w2s, w2l, b2s, b2l = fold_abstract_layer(*params["conv2"], k=k, d_out=d2)
    w3s, w3l, b3s, b3l = fold_abstract_layer(*params["down"], k=k, d_out=d2)
    # fold the layer-1 group-sum into layer-2: s1 @ W2 == tile(W2, (k, 1)) (exact)
    w2s = jnp.tile(w2s, (k, 1))                               # (k*d1, k*d2)
    w2l = jnp.tile(w2l, (k, 1))
    s2 = jnp.tile(jnp.eye(d2, dtype=jnp.float32), (k, 1))     # (k*d2, d2) 0/1 group-sum

    # --- batch tiling --------------------------------------------------------
    if B > block_b:
        tb = block_b
    else:
        # keep >= 2 grid steps when possible so both v7x TensorCores get work
        tb = min(_round_up(max(pl.cdiv(B, 2), 1), 8), _round_up(B, 8))
    n_b = pl.cdiv(B, tb)
    b_pad = n_b * tb

    xs = x.astype(io_dtype)
    if b_pad != B:
        xs = jnp.pad(xs, ((0, b_pad - B), (0, 0)))

    def full(a):  # small parameter, fully resident in VMEM
        return pl.BlockSpec(a.shape, lambda i: (0, 0))

    if shared:
        # concatenate layer-1 / layer-3 weights along N (they share the input x)
        wcs = jnp.concatenate([w1s, w3s], axis=1)             # (d_fix, k*(d1+d2))
        wcl = jnp.concatenate([w1l, w3l], axis=1)
        bcs = jnp.concatenate([b1s, b3s], axis=1)             # (1, k*(d1+d2))
        bcl = jnp.concatenate([b1l, b3l], axis=1)
        zkd2 = jnp.zeros((k * d2, k * d2), jnp.float32)
        w2sp = jnp.concatenate([w2s, zkd2], axis=0)           # (k*(d1+d2), k*d2)
        w2lp = jnp.concatenate([w2l, zkd2], axis=0)
        spad = jnp.concatenate([jnp.zeros((k * d1, d2), jnp.float32), s2], axis=0)
        args = (xs, wcs, wcl, bcs, bcl, w2sp, w2lp, b2s, b2l, s2, spad)
        in_specs = ([pl.BlockSpec((tb, d_fix), lambda i: (i, 0))]
                    + [full(a) for a in args[1:]])
        kernel = functools.partial(_basic_block_kernel_shared, slope=slope)
    else:
        pres = pre_out.astype(io_dtype)
        if b_pad != B:
            pres = jnp.pad(pres, ((0, b_pad - B), (0, 0)))
        args = (pres, xs, w1s, w1l, b1s, b1l, w2s, w2l, b2s, b2l,
                w3s, w3l, b3s, b3l, s2)
        in_specs = ([pl.BlockSpec((tb, d_pre), lambda i: (i, 0)),
                     pl.BlockSpec((tb, d_fix), lambda i: (i, 0))]
                    + [full(a) for a in args[2:]])
        kernel = functools.partial(_basic_block_kernel_split, slope=slope)

    out = pl.pallas_call(
        kernel,
        out_shape=jax.ShapeDtypeStruct((b_pad, d2), io_dtype),
        grid_spec=pltpu.PrefetchScalarGridSpec(
            num_scalar_prefetch=0,
            grid=(n_b,),
            in_specs=in_specs,
            out_specs=pl.BlockSpec((tb, d2), lambda i: (i, 0)),
        ),
        compiler_params=pltpu.CompilerParams(
            dimension_semantics=("parallel",)),
    )(*args)
    # padded rows carry bias-driven garbage; slice them off before anyone reads them
    return out[:B].astype(orig_dtype)


# ----------------------------------------------------------------------------
# Pure-JAX reference mirroring the PyTorch op order (eval mode).
# ----------------------------------------------------------------------------
def abstract_layer_ref(x, ll_w, conv_w, conv_b, gamma, beta, mean, var,
                       *, k, d_out, eps=1e-5):
    d_in = x.shape[1]
    mask = entmax15(ll_w)                                        # (k, d_in)
    masked = jnp.einsum('nd,bd->bnd', mask, x)                   # (B, k, d_in)
    W = conv_w.reshape(k, 2 * d_out, d_in)
    y = jnp.einsum('bkd,kod->bko', masked, W,
                   precision=jax.lax.Precision.HIGHEST) + conv_b.reshape(k, 2 * d_out)
    z = ((y - mean.reshape(k, 2 * d_out)) / jnp.sqrt(var.reshape(k, 2 * d_out) + eps)
         * gamma.reshape(k, 2 * d_out) + beta.reshape(k, 2 * d_out))
    gate = jax.nn.sigmoid(z[:, :, :d_out]) * z[:, :, d_out:]
    return jnp.sum(jnp.maximum(gate, 0.0), axis=1)               # (B, d_out)


def basic_block_ref(x, params, pre_out=None, slope=0.01):
    if pre_out is None:
        pre_out = x
    k = params["k"]
    d1 = params["base_outdim"] // 2
    d2 = params["base_outdim"]
    o1 = abstract_layer_ref(pre_out, *params["conv1"], k=k, d_out=d1)
    o2 = abstract_layer_ref(o1, *params["conv2"], k=k, d_out=d2)
    idn = abstract_layer_ref(x, *params["down"], k=k, d_out=d2)
    y = o2 + idn
    return jnp.where(y >= 0, y, slope * y)


# ----------------------------------------------------------------------------
# Demo / self-check
# ----------------------------------------------------------------------------
def make_abstract_layer_params(key, d_in, d_out, k):
    c = 2 * k * d_out
    k0, k1, k2, k3, k4, k5, k6 = jax.random.split(key, 7)
    ll_w = jax.random.uniform(k0, (k, d_in), dtype=jnp.float32)         # torch.rand init
    conv_w = 0.3 * jax.random.normal(k1, (c, d_in), dtype=jnp.float32)  # xavier-ish
    conv_b = 0.1 * jax.random.normal(k2, (c,), dtype=jnp.float32)
    gamma = 1.0 + 0.1 * jax.random.normal(k3, (c,), dtype=jnp.float32)
    beta = 0.1 * jax.random.normal(k4, (c,), dtype=jnp.float32)
    mean = 0.1 * jax.random.normal(k5, (c,), dtype=jnp.float32)
    var = jax.random.uniform(k6, (c,), dtype=jnp.float32, minval=0.5, maxval=1.5)
    return (ll_w, conv_w, conv_b, gamma, beta, mean, var)


if __name__ == "__main__":
    # Small shapes consistent with the module (eval mode; Dropout / GBN chunking
    # are identity / plain BN at inference).
    B, input_dim, base_outdim, num_groups = 8, 32, 16, 4
    fix_input_dim = input_dim

    key = jax.random.PRNGKey(0)
    kx, kp, k1, k2, k3, k1b, k2b, k3b = jax.random.split(key, 8)
    x = jax.random.normal(kx, (B, input_dim), dtype=jnp.float32)
    params = {
        "k": num_groups,
        "base_outdim": base_outdim,
        "conv1": make_abstract_layer_params(k1, input_dim, base_outdim // 2, num_groups),
        "conv2": make_abstract_layer_params(k2, base_outdim // 2, base_outdim, num_groups),
        "down": make_abstract_layer_params(k3, fix_input_dim, base_outdim, num_groups),
    }
    ref = basic_block_ref(x, params)

    # 1) fp32 activation I/O (tight check against the fp32 reference).
    out32 = jax.block_until_ready(basic_block_forward(x, params, io_dtype=jnp.float32))
    assert out32.shape == (B, base_outdim)
    np.testing.assert_allclose(np.asarray(out32), np.asarray(ref), rtol=5e-3, atol=5e-3)

    # 2) default bf16 activation I/O (HBM-bandwidth optimized path); looser
    #    tolerance only covers the bf16 rounding of x and of the stored output.
    out16 = jax.block_until_ready(basic_block_forward(x, params))
    np.testing.assert_allclose(np.asarray(out16), np.asarray(ref), rtol=2e-2, atol=2e-2)

    # 3) second-block scenario: pre_out != x exercises the split-input kernel.
    params2 = {
        "k": num_groups,
        "base_outdim": base_outdim,
        "conv1": make_abstract_layer_params(k1b, base_outdim, base_outdim // 2, num_groups),
        "conv2": make_abstract_layer_params(k2b, base_outdim // 2, base_outdim, num_groups),
        "down": make_abstract_layer_params(k3b, fix_input_dim, base_outdim, num_groups),
    }
    pre = jax.random.normal(kp, (B, base_outdim), dtype=jnp.float32)
    out2 = jax.block_until_ready(basic_block_forward(x, params2, pre, io_dtype=jnp.float32))
    ref2 = basic_block_ref(x, params2, pre)
    np.testing.assert_allclose(np.asarray(out2), np.asarray(ref2), rtol=5e-3, atol=5e-3)

    print("KERNEL_OK")
</pallas_src>

<mosaic_0001>
module attributes {stable_mosaic.version = 11 : i64} {
  func.func @_basic_block_kernel_shared(%arg0: i32, %arg1: memref<8x32xf32, #tpu.memory_space<vmem>>, %arg2: memref<32x96xf32, #tpu.memory_space<vmem>>, %arg3: memref<32x96xf32, #tpu.memory_space<vmem>>, %arg4: memref<1x96xf32, #tpu.memory_space<vmem>>, %arg5: memref<1x96xf32, #tpu.memory_space<vmem>>, %arg6: memref<96x64xf32, #tpu.memory_space<vmem>>, %arg7: memref<96x64xf32, #tpu.memory_space<vmem>>, %arg8: memref<1x64xf32, #tpu.memory_space<vmem>>, %arg9: memref<1x64xf32, #tpu.memory_space<vmem>>, %arg10: memref<64x16xf32, #tpu.memory_space<vmem>>, %arg11: memref<96x16xf32, #tpu.memory_space<vmem>>, %arg12: memref<8x16xf32, #tpu.memory_space<vmem>>) attributes {dimension_semantics = [#tpu.dimension_semantics<parallel>], iteration_bounds = array<i64: 1>, scalar_prefetch = 0 : i64, scratch_operands = 0 : i64, tpu.core_type = #tpu.core_type<tc>, window_params = [{transform_indices = @transform_0, window_bounds = array<i64: 8, 32>}, {pipeline_mode = #tpu.pipeline_mode<synchronous>, transform_indices = @transform_1, window_bounds = array<i64: 32, 96>}, {pipeline_mode = #tpu.pipeline_mode<synchronous>, transform_indices = @transform_2, window_bounds = array<i64: 32, 96>}, {pipeline_mode = #tpu.pipeline_mode<synchronous>, transform_indices = @transform_3, window_bounds = array<i64: 1, 96>}, {pipeline_mode = #tpu.pipeline_mode<synchronous>, transform_indices = @transform_4, window_bounds = array<i64: 1, 96>}, {pipeline_mode = #tpu.pipeline_mode<synchronous>, transform_indices = @transform_5, window_bounds = array<i64: 96, 64>}, {pipeline_mode = #tpu.pipeline_mode<synchronous>, transform_indices = @transform_6, window_bounds = array<i64: 96, 64>}, {pipeline_mode = #tpu.pipeline_mode<synchronous>, transform_indices = @transform_7, window_bounds = array<i64: 1, 64>}, {pipeline_mode = #tpu.pipeline_mode<synchronous>, transform_indices = @transform_8, window_bounds = array<i64: 1, 64>}, {pipeline_mode = #tpu.pipeline_mode<synchronous>, transform_indices = @transform_9, window_bounds = array<i64: 64, 16>}, {pipeline_mode = #tpu.pipeline_mode<synchronous>, transform_indices = @transform_10, window_bounds = array<i64: 96, 16>}, {transform_indices = @transform_11, window_bounds = array<i64: 8, 16>}]} {
    %c0 = arith.constant 0 : index
    %c0_0 = arith.constant 0 : index
    %0 = vector.load %arg1[%c0, %c0_0] : memref<8x32xf32, #tpu.memory_space<vmem>>, vector<8x32xf32>
    %c0_1 = arith.constant 0 : index
    %c0_2 = arith.constant 0 : index
    %1 = vector.load %arg2[%c0_1, %c0_2] : memref<32x96xf32, #tpu.memory_space<vmem>>, vector<32x96xf32>
    %cst = arith.constant dense<0.000000e+00> : vector<8x96xf32>
    %2 = tpu.matmul %0, %1, %cst {dimension_numbers = #tpu.dot_dimension_numbers<[1], [0], [0], [1], [0, 0, 1, 1], [], []>} : vector<8x32xf32>, vector<32x96xf32>, vector<8x96xf32> -> vector<8x96xf32>
    %c0_3 = arith.constant 0 : index
    %c0_4 = arith.constant 0 : index
    %3 = vector.load %arg4[%c0_3, %c0_4] : memref<1x96xf32, #tpu.memory_space<vmem>>, vector<1x96xf32>
    %4 = vector.broadcast %3 : vector<1x96xf32> to vector<8x96xf32>
    %5 = arith.addf %2, %4 : vector<8x96xf32>
    %c0_5 = arith.constant 0 : index
    %c0_6 = arith.constant 0 : index
    %6 = vector.load %arg3[%c0_5, %c0_6] : memref<32x96xf32, #tpu.memory_space<vmem>>, vector<32x96xf32>
    %cst_7 = arith.constant dense<0.000000e+00> : vector<8x96xf32>
    %7 = tpu.matmul %0, %6, %cst_7 {dimension_numbers = #tpu.dot_dimension_numbers<[1], [0], [0], [1], [0, 0, 1, 1], [], []>} : vector<8x32xf32>, vector<32x96xf32>, vector<8x96xf32> -> vector<8x96xf32>
    %c0_8 = arith.constant 0 : index
    %c0_9 = arith.constant 0 : index
    %8 = vector.load %arg5[%c0_8, %c0_9] : memref<1x96xf32, #tpu.memory_space<vmem>>, vector<1x96xf32>
    %9 = vector.broadcast %8 : vector<1x96xf32> to vector<8x96xf32>
    %10 = arith.addf %7, %9 : vector<8x96xf32>
    %cst_10 = arith.constant 0.000000e+00 : f32
    %11 = vector.broadcast %cst_10 : f32 to vector<8x96xf32>
    %12 = arith.subf %11, %5 : vector<8x96xf32>
    %13 = math.exp %12 : vector<8x96xf32>
    %cst_11 = arith.constant 1.000000e+00 : f32
    %14 = vector.broadcast %cst_11 : f32 to vector<8x96xf32>
    %15 = arith.addf %14, %13 : vector<8x96xf32>
    %16 = tpu.reciprocal %15 {approx = true} : vector<8x96xf32> -> vector<8x96xf32>
    %17 = arith.mulf %16, %10 : vector<8x96xf32>
    %cst_12 = arith.constant 0.000000e+00 : f32
    %18 = vector.broadcast %cst_12 : f32 to vector<8x96xf32>
    %19 = arith.maximumf %17, %18 : vector<8x96xf32>
    %c0_13 = arith.constant 0 : index
    %c0_14 = arith.constant 0 : index
    %20 = vector.load %arg6[%c0_13, %c0_14] : memref<96x64xf32, #tpu.memory_space<vmem>>, vector<96x64xf32>
    %cst_15 = arith.constant dense<0.000000e+00> : vector<8x64xf32>
    %21 = tpu.matmul %19, %20, %cst_15 {dimension_numbers = #tpu.dot_dimension_numbers<[1], [0], [0], [1], [0, 0, 1, 1], [], []>} : vector<8x96xf32>, vector<96x64xf32>, vector<8x64xf32> -> vector<8x64xf32>
    %c0_16 = arith.constant 0 : index
    %c0_17 = arith.constant 0 : index
    %22 = vector.load %arg8[%c0_16, %c0_17] : memref<1x64xf32, #tpu.memory_space<vmem>>, vector<1x64xf32>
    %23 = vector.broadcast %22 : vector<1x64xf32> to vector<8x64xf32>
    %24 = arith.addf %21, %23 : vector<8x64xf32>
    %c0_18 = arith.constant 0 : index
    %c0_19 = arith.constant 0 : index
    %25 = vector.load %arg7[%c0_18, %c0_19] : memref<96x64xf32, #tpu.memory_space<vmem>>, vector<96x64xf32>
    %cst_20 = arith.constant dense<0.000000e+00> : vector<8x64xf32>
    %26 = tpu.matmul %19, %25, %cst_20 {dimension_numbers = #tpu.dot_dimension_numbers<[1], [0], [0], [1], [0, 0, 1, 1], [], []>} : vector<8x96xf32>, vector<96x64xf32>, vector<8x64xf32> -> vector<8x64xf32>
    %c0_21 = arith.constant 0 : index
    %c0_22 = arith.constant 0 : index
    %27 = vector.load %arg9[%c0_21, %c0_22] : memref<1x64xf32, #tpu.memory_space<vmem>>, vector<1x64xf32>
    %28 = vector.broadcast %27 : vector<1x64xf32> to vector<8x64xf32>
    %29 = arith.addf %26, %28 : vector<8x64xf32>
    %cst_23 = arith.constant 0.000000e+00 : f32
    %30 = vector.broadcast %cst_23 : f32 to vector<8x64xf32>
    %31 = arith.subf %30, %24 : vector<8x64xf32>
    %32 = math.exp %31 : vector<8x64xf32>
    %cst_24 = arith.constant 1.000000e+00 : f32
    %33 = vector.broadcast %cst_24 : f32 to vector<8x64xf32>
    %34 = arith.addf %33, %32 : vector<8x64xf32>
    %35 = tpu.reciprocal %34 {approx = true} : vector<8x64xf32> -> vector<8x64xf32>
    %36 = arith.mulf %35, %29 : vector<8x64xf32>
    %cst_25 = arith.constant 0.000000e+00 : f32
    %37 = vector.broadcast %cst_25 : f32 to vector<8x64xf32>
    %38 = arith.maximumf %36, %37 : vector<8x64xf32>
    %c0_26 = arith.constant 0 : index
    %c0_27 = arith.constant 0 : index
    %39 = vector.load %arg10[%c0_26, %c0_27] : memref<64x16xf32, #tpu.memory_space<vmem>>, vector<64x16xf32>
    %cst_28 = arith.constant dense<0.000000e+00> : vector<8x16xf32>
    %40 = tpu.matmul %38, %39, %cst_28 {dimension_numbers = #tpu.dot_dimension_numbers<[1], [0], [0], [1], [0, 0, 1, 1], [], []>} : vector<8x64xf32>, vector<64x16xf32>, vector<8x16xf32> -> vector<8x16xf32>
    %c0_29 = arith.constant 0 : index
    %c0_30 = arith.constant 0 : index
    %41 = vector.load %arg11[%c0_29, %c0_30] : memref<96x16xf32, #tpu.memory_space<vmem>>, vector<96x16xf32>
    %cst_31 = arith.constant dense<0.000000e+00> : vector<8x16xf32>
    %42 = tpu.matmul %19, %41, %cst_31 {dimension_numbers = #tpu.dot_dimension_numbers<[1], [0], [0], [1], [0, 0, 1, 1], [], []>} : vector<8x96xf32>, vector<96x16xf32>, vector<8x16xf32> -> vector<8x16xf32>
    %43 = arith.addf %40, %42 : vector<8x16xf32>
    %cst_32 = arith.constant 0.00999999977 : f32
    %44 = vector.broadcast %cst_32 : f32 to vector<8x16xf32>
    %45 = arith.mulf %44, %43 : vector<8x16xf32>
    %46 = arith.maximumf %43, %45 : vector<8x16xf32>
    %c0_33 = arith.constant 0 : index
    %c0_34 = arith.constant 0 : index
    %47 = vector.load %arg12[%c0_33, %c0_34] : memref<8x16xf32, #tpu.memory_space<vmem>>, vector<8x16xf32>
    tpu.vector_store %arg12[%c0_33, %c0_34], %46 {strides = array<i32>} : memref<8x16xf32, #tpu.memory_space<vmem>>, vector<8x16xf32>,
    return
  }
  func.func @transform_0(%arg0: i32) -> (i32, i32) {
    %c0_i32 = arith.constant 0 : i32
    %c0_i32_0 = arith.constant 0 : i32
    return %arg0, %c0_i32 : i32, i32
  }
  func.func @transform_1(%arg0: i32) -> (i32, i32) {
    %c0_i32 = arith.constant 0 : i32
    %c0_i32_0 = arith.constant 0 : i32
    %c0_i32_1 = arith.constant 0 : i32
    return %c0_i32, %c0_i32_0 : i32, i32
  }
  func.func @transform_2(%arg0: i32) -> (i32, i32) {
    %c0_i32 = arith.constant 0 : i32
    %c0_i32_0 = arith.constant 0 : i32
    %c0_i32_1 = arith.constant 0 : i32
    return %c0_i32, %c0_i32_0 : i32, i32
  }
  func.func @transform_3(%arg0: i32) -> (i32, i32) {
    %c0_i32 = arith.constant 0 : i32
    %c0_i32_0 = arith.constant 0 : i32
    %c0_i32_1 = arith.constant 0 : i32
    return %c0_i32, %c0_i32_0 : i32, i32
  }
  func.func @transform_4(%arg0: i32) -> (i32, i32) {
    %c0_i32 = arith.constant 0 : i32
    %c0_i32_0 = arith.constant 0 : i32
    %c0_i32_1 = arith.constant 0 : i32
    return %c0_i32, %c0_i32_0 : i32, i32
  }
  func.func @transform_5(%arg0: i32) -> (i32, i32) {
    %c0_i32 = arith.constant 0 : i32
    %c0_i32_0 = arith.constant 0 : i32
    %c0_i32_1 = arith.constant 0 : i32
    return %c0_i32, %c0_i32_0 : i32, i32
  }
  func.func @transform_6(%arg0: i32) -> (i32, i32) {
    %c0_i32 = arith.constant 0 : i32
    %c0_i32_0 = arith.constant 0 : i32
    %c0_i32_1 = arith.constant 0 : i32
    return %c0_i32, %c0_i32_0 : i32, i32
  }
  func.func @transform_7(%arg0: i32) -> (i32, i32) {
    %c0_i32 = arith.constant 0 : i32
    %c0_i32_0 = arith.constant 0 : i32
    %c0_i32_1 = arith.constant 0 : i32
    return %c0_i32, %c0_i32_0 : i32, i32
  }
  func.func @transform_8(%arg0: i32) -> (i32, i32) {
    %c0_i32 = arith.constant 0 : i32
    %c0_i32_0 = arith.constant 0 : i32
    %c0_i32_1 = arith.constant 0 : i32
    return %c0_i32, %c0_i32_0 : i32, i32
  }
  func.func @transform_9(%arg0: i32) -> (i32, i32) {
    %c0_i32 = arith.constant 0 : i32
    %c0_i32_0 = arith.constant 0 : i32
    %c0_i32_1 = arith.constant 0 : i32
    return %c0_i32, %c0_i32_0 : i32, i32
  }
  func.func @transform_10(%arg0: i32) -> (i32, i32) {
    %c0_i32 = arith.constant 0 : i32
    %c0_i32_0 = arith.constant 0 : i32
    %c0_i32_1 = arith.constant 0 : i32
    return %c0_i32, %c0_i32_0 : i32, i32
  }
  func.func @transform_11(%arg0: i32) -> (i32, i32) {
    %c0_i32 = arith.constant 0 : i32
    %c0_i32_0 = arith.constant 0 : i32
    return %arg0, %c0_i32 : i32, i32
  }
}

</mosaic_0001>

<llo_original>
// kernel: tpu_custom_call.1
$region0: #{tpu_custom_call.1}
  #allocation0 [shape = 'u32[]', space=smem, size = 0x4, offset = 0x4, fixed_abs, tag = 'smem constant byte address 0x4 - core index']
  #allocation1 [shape = 'u32[144,128]{1,0:T(1,128)}', space=vmem, size = 0x12000, scoped, tag = 'internal scratch']
  %s0 = inlined_call_operand.vmem [shape: f32[8,32], index: 0, kind: input, shape index: {}]
  %s1 = inlined_call_operand.vmem [shape: f32[32,96], index: 1, kind: input, shape index: {}]
  %s2 = inlined_call_operand.vmem [shape: f32[32,96], index: 2, kind: input, shape index: {}]
  %s3 = inlined_call_operand.vmem [shape: f32[1,96], index: 3, kind: input, shape index: {}]
  %s4 = inlined_call_operand.vmem [shape: f32[1,96], index: 4, kind: input, shape index: {}]
  %s5 = inlined_call_operand.vmem [shape: f32[96,64], index: 5, kind: input, shape index: {}]
  %s6 = inlined_call_operand.vmem [shape: f32[96,64], index: 6, kind: input, shape index: {}]
  %s7 = inlined_call_operand.vmem [shape: f32[1,64], index: 7, kind: input, shape index: {}]
  %s8 = inlined_call_operand.vmem [shape: f32[1,64], index: 8, kind: input, shape index: {}]
  %s9 = inlined_call_operand.vmem [shape: f32[64,16], index: 9, kind: input, shape index: {}]
  %s10 = inlined_call_operand.vmem [shape: f32[96,16], index: 10, kind: input, shape index: {}]
  %s11 = inlined_call_operand.hbm [shape: f32[8,16], index: 11, kind: output, shape index: {}]
  %s12 = sld [smem:[#allocation0]]
  $region54: #{tpu_custom_call.1} parent=0
    _
  %s14 = ssub.s32 1, %s12
  %s15 = scalar_select 0, %s14, %s12
  $region1: #{tpu_custom_call.1} parent=0
    #allocation2 [shape = 'u8[4096]{0}', space=vmem, size = 0x1000, scoped, tag = 'output window, operand 0, single buffered']
    #allocation3 [shape = 's32[1]{0}', space=sflag, size = 0x4, scoped, tag = 'scoped memory for tpu_custom_call.1']
    %16 = vsyncpa [#allocation3], 0
    // Predicated region
    $region2: #{tpu_custom_call.1} parent=1 // pred_check
      _
    $region3: #{tpu_custom_call.1} parent=1 // pred_check_branch
      %18 = sbr.rel (0) target = $region5
    $region4: #{tpu_custom_call.1} parent=1 // pred_region
      _
    $region5: #{tpu_custom_call.1} parent=1 // pred_fallthru
      _
    // Predicated region
    $region6: #{tpu_custom_call.1} parent=1 // pred_check
      _
    $region7: #{tpu_custom_call.1} parent=1 // pred_check_branch
      %20 = sbr.rel (0) target = $region9
    $region8: #{tpu_custom_call.1} parent=1 // pred_region
      _
    $region9: #{tpu_custom_call.1} parent=1 // pred_fallthru
      _
    // Predicated region
    $region10: #{tpu_custom_call.1} parent=1 // pred_check
      _
    $region11: #{tpu_custom_call.1} parent=1 // pred_check_branch
      %22 = sbr.rel (0) target = $region13
    $region12: #{tpu_custom_call.1} parent=1 // pred_region
      _
    $region13: #{tpu_custom_call.1} parent=1 // pred_fallthru
      _
    // Predicated region
    $region14: #{tpu_custom_call.1} parent=1 // pred_check
      _
    $region15: #{tpu_custom_call.1} parent=1 // pred_check_branch
      %24 = sbr.rel (0) target = $region17
    $region16: #{tpu_custom_call.1} parent=1 // pred_region
      _
    $region17: #{tpu_custom_call.1} parent=1 // pred_fallthru
      _
    // Predicated region
    $region18: #{tpu_custom_call.1} parent=1 // pred_check
      _
    $region19: #{tpu_custom_call.1} parent=1 // pred_check_branch
      %26 = sbr.rel (0) target = $region21
    $region20: #{tpu_custom_call.1} parent=1 // pred_region
      _
    $region21: #{tpu_custom_call.1} parent=1 // pred_fallthru
      _
    // Predicated region
    $region22: #{tpu_custom_call.1} parent=1 // pred_check
      _
    $region23: #{tpu_custom_call.1} parent=1 // pred_check_branch
      %28 = sbr.rel (0) target = $region25
    $region24: #{tpu_custom_call.1} parent=1 // pred_region
      _
    $region25: #{tpu_custom_call.1} parent=1 // pred_fallthru
      _
    // Predicated region
    $region26: #{tpu_custom_call.1} parent=1 // pred_check
      _
    $region27: #{tpu_custom_call.1} parent=1 // pred_check_branch
      %30 = sbr.rel (0) target = $region29
    $region28: #{tpu_custom_call.1} parent=1 // pred_region
      _
    $region29: #{tpu_custom_call.1} parent=1 // pred_fallthru
      _
    // Predicated region
    $region30: #{tpu_custom_call.1} parent=1 // pred_check
      _
    $region31: #{tpu_custom_call.1} parent=1 // pred_check_branch
      %32 = sbr.rel (0) target = $region33
    $region32: #{tpu_custom_call.1} parent=1 // pred_region
      _
    $region33: #{tpu_custom_call.1} parent=1 // pred_fallthru
      _
    // Predicated region
    $region34: #{tpu_custom_call.1} parent=1 // pred_check
      _
    $region35: #{tpu_custom_call.1} parent=1 // pred_check_branch
      %34 = sbr.rel (0) target = $region37
    $region36: #{tpu_custom_call.1} parent=1 // pred_region
      _
    $region37: #{tpu_custom_call.1} parent=1 // pred_fallthru
      _
    // Predicated region
    $region38: #{tpu_custom_call.1} parent=1 // pred_check
      _
    $region39: #{tpu_custom_call.1} parent=1 // pred_check_branch
      %36 = sbr.rel (0) target = $region41
    $region40: #{tpu_custom_call.1} parent=1 // pred_region
      _
    $region41: #{tpu_custom_call.1} parent=1 // pred_fallthru
      _
    // Predicated region
    $region42: #{tpu_custom_call.1} parent=1 // pred_check
      _
    $region43: #{tpu_custom_call.1} parent=1 // pred_check_branch
      %38 = sbr.rel (0) target = $region45
    $region44: #{tpu_custom_call.1} parent=1 // pred_region
      _
    $region45: #{tpu_custom_call.1} parent=1 // pred_fallthru
      _
    %v39 = vld [vmem:[%s0] sm:$0xff]
    %v40 = vld [vmem:[%s1] sm:$0xff]
    %v41 = vld [vmem:[%s1 + $0x8] sm:$0xff]
    %v42 = vld [vmem:[%s1 + $0x10] sm:$0xff]
    %v43 = vld [vmem:[%s1 + $0x18] sm:$0xff]
    %v44 = vld [vmem:[%s3] sm:$0x1]
    %v46 = vlaneseq
    %v47 = vshrl.u32 %v46, 7
    %v48 = vsub.s32 0, %v47
    %v49 = vrot.slane %v44, %v48
    %vm51 = vcmask 261120
    %v53 = vsel %vm51, %v39, 0
    %55 = vmatprep.subr.mxu0 0.0
    %56 = vmatpush1.msra.mxu0 %v40
    %57 = vmatprep.subr.mxu0 0.0
    %58 = vmatpush1.msra.mxu0 %v41
    %59 = vmatprep.subr.mxu0 0.0
    %60 = vmatpush1.msra.mxu0 %v42
    %61 = vmatprep.subr.mxu0 0.0
    %62 = vmatpush1.msra.mxu0 %v43
    %63 = vmatprep.subr.mxu0 0.0
    %64 = vmatpush1.msra.mxu0 0.0
    %65 = vmatprep.subr.mxu0 0.0
    %66 = vmatpush1.msra.mxu0 0.0
    %67 = vmatprep.subr.mxu0 0.0
    %68 = vmatpush1.msra.mxu0 0.0
    %69 = vmatprep.subr.mxu0 0.0
    %70 = vmatpush1.msra.mxu0 0.0
    %71 = vmatprep.subr.mxu0 0.0
    %72 = vmatpush1.msra.mxu0 0.0
    %73 = vmatprep.subr.mxu0 0.0
    %74 = vmatpush1.msra.mxu0 0.0
    %75 = vmatprep.subr.mxu0 0.0
    %76 = vmatpush1.msra.mxu0 0.0
    %77 = vmatprep.subr.mxu0 0.0
    %78 = vmatpush1.msra.mxu0 0.0
    %79 = vmatprep.subr.mxu0 0.0
    %80 = vmatpush1.msra.mxu0 0.0
    %81 = vmatprep.subr.mxu0 0.0
    %82 = vmatpush1.msra.mxu0 0.0
    %83 = vmatprep.subr.mxu0 0.0
    %84 = vmatpush1.msra.mxu0 0.0
    %85 = vmatprep.subr.mxu0 0.0
    %86 = vmatpush1.msra.mxu0 0.0
    %87 = vmatprep.subr.mxu0 0.0
    %88 = vmatpush1.msra.mxu0 0.0
    %89 = vmatprep.subr.mxu0 0.0
    %90 = vmatpush1.msra.mxu0 0.0
    %91 = vmatprep.subr.mxu0 0.0
    %92 = vmatpush1.msra.mxu0 0.0
    %93 = vmatprep.subr.mxu0 0.0
    %94 = vmatpush1.msra.mxu0 0.0
    %95 = vmatprep.subr.mxu0 0.0
    %96 = vmatpush1.msra.mxu0 0.0
    %97 = vmatprep.subr.mxu0 0.0
    %98 = vmatpush1.msra.mxu0 0.0
    %99 = vmatprep.subr.mxu0 0.0
    %100 = vmatpush1.msra.mxu0 0.0
    %101 = vmatprep.subr.mxu0 0.0
    %102 = vmatpush1.msra.mxu0 0.0
    %103 = vmatprep.subr.mxu0 0.0
    %104 = vmatpush1.msra.mxu0 0.0
    %105 = vmatprep.subr.mxu0 0.0
    %106 = vmatpush1.msra.mxu0 0.0
    %107 = vmatprep.subr.mxu0 0.0
    %108 = vmatpush1.msra.mxu0 0.0
    %109 = vmatprep.subr.mxu0 0.0
    %110 = vmatpush1.msra.mxu0 0.0
    %111 = vmatprep.subr.mxu0 0.0
    %112 = vmatpush1.msra.mxu0 0.0
    %113 = vmatprep.subr.mxu0 0.0
    %114 = vmatpush1.msra.mxu0 0.0
    %115 = vmatprep.subr.mxu0 0.0
    %116 = vmatpush1.msra.mxu0 0.0
    %117 = vmatprep.subr.mxu0 0.0
    %118 = vmatpush1.msra.mxu0 0.0
    %119 = vmatprep.mubr.f32.mxu0 0.0
    %120 = vmatmul.mubr.f32.gmra.mrb[0].mxu0 %v53
    %v121 = vpop.f32.mrb[0].mxu0
    %v122 = vadd.f32 %v49, %v121
    %v123 = vpop.f32.mrb[0].mxu0
    %124 = vdwg.mxu0
    %v125 = vld [vmem:[%s2] sm:$0xff]
    %v126 = vld [vmem:[%s2 + $0x8] sm:$0xff]
    %v127 = vld [vmem:[%s2 + $0x10] sm:$0xff]
    %v128 = vld [vmem:[%s2 + $0x18] sm:$0xff]
    %v129 = vld [vmem:[%s4] sm:$0x1]
    %v131 = vlaneseq
    %v132 = vshrl.u32 %v131, 7
    %v133 = vsub.s32 0, %v132
    %v134 = vrot.slane %v129, %v133
    %136 = vmatprep.subr.mxu0 0.0
    %137 = vmatpush1.msra.mxu0 %v125
    %138 = vmatprep.subr.mxu0 0.0
    %139 = vmatpush1.msra.mxu0 %v126
    %140 = vmatprep.subr.mxu0 0.0
    %141 = vmatpush1.msra.mxu0 %v127
    %142 = vmatprep.subr.mxu0 0.0
    %143 = vmatpush1.msra.mxu0 %v128
    %144 = vmatprep.subr.mxu0 0.0
    %145 = vmatpush1.msra.mxu0 0.0
    %146 = vmatprep.subr.mxu0 0.0
    %147 = vmatpush1.msra.mxu0 0.0
    %148 = vmatprep.subr.mxu0 0.0
    %149 = vmatpush1.msra.mxu0 0.0
    %150 = vmatprep.subr.mxu0 0.0
    %151 = vmatpush1.msra.mxu0 0.0
    %152 = vmatprep.subr.mxu0 0.0
    %153 = vmatpush1.msra.mxu0 0.0
    %154 = vmatprep.subr.mxu0 0.0
    %155 = vmatpush1.msra.mxu0 0.0
    %156 = vmatprep.subr.mxu0 0.0
    %157 = vmatpush1.msra.mxu0 0.0
    %158 = vmatprep.subr.mxu0 0.0
    %159 = vmatpush1.msra.mxu0 0.0
    %160 = vmatprep.subr.mxu0 0.0
    %161 = vmatpush1.msra.mxu0 0.0
    %162 = vmatprep.subr.mxu0 0.0
    %163 = vmatpush1.msra.mxu0 0.0
    %164 = vmatprep.subr.mxu0 0.0
    %165 = vmatpush1.msra.mxu0 0.0
    %166 = vmatprep.subr.mxu0 0.0
    %167 = vmatpush1.msra.mxu0 0.0
    %168 = vmatprep.subr.mxu0 0.0
    %169 = vmatpush1.msra.mxu0 0.0
    %170 = vmatprep.subr.mxu0 0.0
    %171 = vmatpush1.msra.mxu0 0.0
    %172 = vmatprep.subr.mxu0 0.0
    %173 = vmatpush1.msra.mxu0 0.0
    %174 = vmatprep.subr.mxu0 0.0
    %175 = vmatpush1.msra.mxu0 0.0
    %176 = vmatprep.subr.mxu0 0.0
    %177 = vmatpush1.msra.mxu0 0.0
    %178 = vmatprep.subr.mxu0 0.0
    %179 = vmatpush1.msra.mxu0 0.0
    %180 = vmatprep.subr.mxu0 0.0
    %181 = vmatpush1.msra.mxu0 0.0
    %182 = vmatprep.subr.mxu0 0.0
    %183 = vmatpush1.msra.mxu0 0.0
    %184 = vmatprep.subr.mxu0 0.0
    %185 = vmatpush1.msra.mxu0 0.0
    %186 = vmatprep.subr.mxu0 0.0
    %187 = vmatpush1.msra.mxu0 0.0
    %188 = vmatprep.subr.mxu0 0.0
    %189 = vmatpush1.msra.mxu0 0.0
    %190 = vmatprep.subr.mxu0 0.0
    %191 = vmatpush1.msra.mxu0 0.0
    %192 = vmatprep.subr.mxu0 0.0
    %193 = vmatpush1.msra.mxu0 0.0
    %194 = vmatprep.subr.mxu0 0.0
    %195 = vmatpush1.msra.mxu0 0.0
    %196 = vmatprep.subr.mxu0 0.0
    %197 = vmatpush1.msra.mxu0 0.0
    %198 = vmatprep.subr.mxu0 0.0
    %199 = vmatpush1.msra.mxu0 0.0
    %200 = vmatprep.mubr.f32.mxu0 0.0
    %201 = vmatmul.mubr.f32.gmra.mrb[0].mxu0 %v53
    %v202 = vpop.f32.mrb[0].mxu0
    %v203 = vadd.f32 %v134, %v202
    %v204 = vpop.f32.mrb[0].mxu0
    %205 = vdwg.mxu0
    %v206 = vsub.f32 0.0, %v122
    %v207 = vmul.f32 %v206, 1.442695
    %v208 = vpow.pop %v207
    %v209 = vadd.f32 %v208, 1.0
    %v210 = vrcp.pop %v209
    %v211 = vmul.f32 %v210, %v203
    %v212 = vmax.f32 %v211, 0.0
    %v213 = vld [vmem:[%s5] sm:$0xff]
    %v214 = vld [vmem:[%s5 + $0x8] sm:$0xff]
    %v215 = vld [vmem:[%s5 + $0x10] sm:$0xff]
    %v216 = vld [vmem:[%s5 + $0x18] sm:$0xff]
    %v217 = vld [vmem:[%s5 + $0x20] sm:$0xff]
    %v218 = vld [vmem:[%s5 + $0x28] sm:$0xff]
    %v219 = vld [vmem:[%s5 + $0x30] sm:$0xff]
    %v220 = vld [vmem:[%s5 + $0x38] sm:$0xff]
    %v221 = vld [vmem:[%s5 + $0x40] sm:$0xff]
    %v222 = vld [vmem:[%s5 + $0x48] sm:$0xff]
    %v223 = vld [vmem:[%s5 + $0x50] sm:$0xff]
    %v224 = vld [vmem:[%s5 + $0x58] sm:$0xff]
    %v225 = vld [vmem:[%s7] sm:$0x1]
    %v227 = vlaneseq
    %v228 = vshrl.u32 %v227, 7
    %v229 = vsub.s32 0, %v228
    %v230 = vrot.slane %v225, %v229
    %vm232 = vcmask 785408
    %v234 = vsel %vm232, %v212, 0
    %236 = vmatprep.subr.mxu0 0.0
    %237 = vmatpush1.msra.mxu0 %v213
    %238 = vmatprep.subr.mxu0 0.0
    %239 = vmatpush1.msra.mxu0 %v214
    %240 = vmatprep.subr.mxu0 0.0
    %241 = vmatpush1.msra.mxu0 %v215
    %242 = vmatprep.subr.mxu0 0.0
    %243 = vmatpush1.msra.mxu0 %v216
    %244 = vmatprep.subr.mxu0 0.0
    %245 = vmatpush1.msra.mxu0 %v217
    %246 = vmatprep.subr.mxu0 0.0
    %247 = vmatpush1.msra.mxu0 %v218
    %248 = vmatprep.subr.mxu0 0.0
    %249 = vmatpush1.msra.mxu0 %v219
    %250 = vmatprep.subr.mxu0 0.0
    %251 = vmatpush1.msra.mxu0 %v220
    %252 = vmatprep.subr.mxu0 0.0
    %253 = vmatpush1.msra.mxu0 %v221
    %254 = vmatprep.subr.mxu0 0.0
    %255 = vmatpush1.msra.mxu0 %v222
    %256 = vmatprep.subr.mxu0 0.0
    %257 = vmatpush1.msra.mxu0 %v223
    %258 = vmatprep.subr.mxu0 0.0
    %259 = vmatpush1.msra.mxu0 %v224
    %260 = vmatprep.subr.mxu0 0.0
    %261 = vmatpush1.msra.mxu0 0.0
    %262 = vmatprep.subr.mxu0 0.0
    %263 = vmatpush1.msra.mxu0 0.0
    %264 = vmatprep.subr.mxu0 0.0
    %265 = vmatpush1.msra.mxu0 0.0
    %266 = vmatprep.subr.mxu0 0.0
    %267 = vmatpush1.msra.mxu0 0.0
    %268 = vmatprep.subr.mxu0 0.0
    %269 = vmatpush1.msra.mxu0 0.0
    %270 = vmatprep.subr.mxu0 0.0
    %271 = vmatpush1.msra.mxu0 0.0
    %272 = vmatprep.subr.mxu0 0.0
    %273 = vmatpush1.msra.mxu0 0.0
    %274 = vmatprep.subr.mxu0 0.0
    %275 = vmatpush1.msra.mxu0 0.0
    %276 = vmatprep.subr.mxu0 0.0
    %277 = vmatpush1.msra.mxu0 0.0
    %278 = vmatprep.subr.mxu0 0.0
    %279 = vmatpush1.msra.mxu0 0.0
    %280 = vmatprep.subr.mxu0 0.0
    %281 = vmatpush1.msra.mxu0 0.0
    %282 = vmatprep.subr.mxu0 0.0
    %283 = vmatpush1.msra.mxu0 0.0
    %284 = vmatprep.subr.mxu0 0.0
    %285 = vmatpush1.msra.mxu0 0.0
    %286 = vmatprep.subr.mxu0 0.0
    %287 = vmatpush1.msra.mxu0 0.0
    %288 = vmatprep.subr.mxu0 0.0
    %289 = vmatpush1.msra.mxu0 0.0
    %290 = vmatprep.subr.mxu0 0.0
    %291 = vmatpush1.msra.mxu0 0.0
    %292 = vmatprep.subr.mxu0 0.0
    %293 = vmatpush1.msra.mxu0 0.0
    %294 = vmatprep.subr.mxu0 0.0
    %295 = vmatpush1.msra.mxu0 0.0
    %296 = vmatprep.subr.mxu0 0.0
    %297 = vmatpush1.msra.mxu0 0.0
    %298 = vmatprep.subr.mxu0 0.0
    %299 = vmatpush1.msra.mxu0 0.0
    %300 = vmatprep.mubr.f32.mxu0 0.0
    %301 = vmatmul.mubr.f32.gmra.mrb[0].mxu0 %v234
    %v302 = vpop.f32.mrb[0].mxu0
    %v303 = vadd.f32 %v230, %v302
    %v304 = vpop.f32.mrb[0].mxu0
    %305 = vdwg.mxu0
    %v306 = vld [vmem:[%s6] sm:$0xff]
    %v307 = vld [vmem:[%s6 + $0x8] sm:$0xff]
    %v308 = vld [vmem:[%s6 + $0x10] sm:$0xff]
    %v309 = vld [vmem:[%s6 + $0x18] sm:$0xff]
    %v310 = vld [vmem:[%s6 + $0x20] sm:$0xff]
    %v311 = vld [vmem:[%s6 + $0x28] sm:$0xff]
    %v312 = vld [vmem:[%s6 + $0x30] sm:$0xff]
    %v313 = vld [vmem:[%s6 + $0x38] sm:$0xff]
    %v314 = vld [vmem:[%s6 + $0x40] sm:$0xff]
    %v315 = vld [vmem:[%s6 + $0x48] sm:$0xff]
    %v316 = vld [vmem:[%s6 + $0x50] sm:$0xff]
    %v317 = vld [vmem:[%s6 + $0x58] sm:$0xff]
    %v318 = vld [vmem:[%s8] sm:$0x1]
    %v320 = vlaneseq
    %v321 = vshrl.u32 %v320, 7
    %v322 = vsub.s32 0, %v321
    %v323 = vrot.slane %v318, %v322
    %325 = vmatprep.subr.mxu0 0.0
    %326 = vmatpush1.msra.mxu0 %v306
    %327 = vmatprep.subr.mxu0 0.0
    %328 = vmatpush1.msra.mxu0 %v307
    %329 = vmatprep.subr.mxu0 0.0
    %330 = vmatpush1.msra.mxu0 %v308
    %331 = vmatprep.subr.mxu0 0.0
    %332 = vmatpush1.msra.mxu0 %v309
    %333 = vmatprep.subr.mxu0 0.0
    %334 = vmatpush1.msra.mxu0 %v310
    %335 = vmatprep.subr.mxu0 0.0
    %336 = vmatpush1.msra.mxu0 %v311
    %337 = vmatprep.subr.mxu0 0.0
    %338 = vmatpush1.msra.mxu0 %v312
    %339 = vmatprep.subr.mxu0 0.0
    %340 = vmatpush1.msra.mxu0 %v313
    %341 = vmatprep.subr.mxu0 0.0
    %342 = vmatpush1.msra.mxu0 %v314
    %343 = vmatprep.subr.mxu0 0.0
    %344 = vmatpush1.msra.mxu0 %v315
    %345 = vmatprep.subr.mxu0 0.0
    %346 = vmatpush1.msra.mxu0 %v316
    %347 = vmatprep.subr.mxu0 0.0
    %348 = vmatpush1.msra.mxu0 %v317
    %349 = vmatprep.subr.mxu0 0.0
    %350 = vmatpush1.msra.mxu0 0.0
    %351 = vmatprep.subr.mxu0 0.0
    %352 = vmatpush1.msra.mxu0 0.0
    %353 = vmatprep.subr.mxu0 0.0
    %354 = vmatpush1.msra.mxu0 0.0
    %355 = vmatprep.subr.mxu0 0.0
    %356 = vmatpush1.msra.mxu0 0.0
    %357 = vmatprep.subr.mxu0 0.0
    %358 = vmatpush1.msra.mxu0 0.0
    %359 = vmatprep.subr.mxu0 0.0
    %360 = vmatpush1.msra.mxu0 0.0
    %361 = vmatprep.subr.mxu0 0.0
    %362 = vmatpush1.msra.mxu0 0.0
    %363 = vmatprep.subr.mxu0 0.0
    %364 = vmatpush1.msra.mxu0 0.0
    %365 = vmatprep.subr.mxu0 0.0
    %366 = vmatpush1.msra.mxu0 0.0
    %367 = vmatprep.subr.mxu0 0.0
    %368 = vmatpush1.msra.mxu0 0.0
    %369 = vmatprep.subr.mxu0 0.0
    %370 = vmatpush1.msra.mxu0 0.0
    %371 = vmatprep.subr.mxu0 0.0
    %372 = vmatpush1.msra.mxu0 0.0
    %373 = vmatprep.subr.mxu0 0.0
    %374 = vmatpush1.msra.mxu0 0.0
    %375 = vmatprep.subr.mxu0 0.0
    %376 = vmatpush1.msra.mxu0 0.0
    %377 = vmatprep.subr.mxu0 0.0
    %378 = vmatpush1.msra.mxu0 0.0
    %379 = vmatprep.subr.mxu0 0.0
    %380 = vmatpush1.msra.mxu0 0.0
    %381 = vmatprep.subr.mxu0 0.0
    %382 = vmatpush1.msra.mxu0 0.0
    %383 = vmatprep.subr.mxu0 0.0
    %384 = vmatpush1.msra.mxu0 0.0
    %385 = vmatprep.subr.mxu0 0.0
    %386 = vmatpush1.msra.mxu0 0.0
    %387 = vmatprep.subr.mxu0 0.0
    %388 = vmatpush1.msra.mxu0 0.0
    %389 = vmatprep.mubr.f32.mxu0 0.0
    %390 = vmatmul.mubr.f32.gmra.mrb[0].mxu0 %v234
    %v391 = vpop.f32.mrb[0].mxu0
    %v392 = vadd.f32 %v323, %v391
    %v393 = vpop.f32.mrb[0].mxu0
    %394 = vdwg.mxu0
    %v395 = vsub.f32 0.0, %v303
    %v396 = vmul.f32 %v395, 1.442695
    %v397 = vpow.pop %v396
    %v398 = vadd.f32 %v397, 1.0
    %v399 = vrcp.pop %v398
    %v400 = vmul.f32 %v399, %v392
    %v401 = vmax.f32 %v400, 0.0
    %v402 = vld [vmem:[%s9] sm:$0xff]
    %v403 = vld [vmem:[%s9 + $0x8] sm:$0xff]
    %v404 = vld [vmem:[%s9 + $0x10] sm:$0xff]
    %v405 = vld [vmem:[%s9 + $0x18] sm:$0xff]
    %v406 = vld [vmem:[%s9 + $0x20] sm:$0xff]
    %v407 = vld [vmem:[%s9 + $0x28] sm:$0xff]
    %v408 = vld [vmem:[%s9 + $0x30] sm:$0xff]
    %v409 = vld [vmem:[%s9 + $0x38] sm:$0xff]
    %v410 = vld [vmem:[%s10] sm:$0xff]
    %v411 = vld [vmem:[%s10 + $0x8] sm:$0xff]
    %v412 = vld [vmem:[%s10 + $0x10] sm:$0xff]
    %v413 = vld [vmem:[%s10 + $0x18] sm:$0xff]
    %v414 = vld [vmem:[%s10 + $0x20] sm:$0xff]
    %v415 = vld [vmem:[%s10 + $0x28] sm:$0xff]
    %v416 = vld [vmem:[%s10 + $0x30] sm:$0xff]
    %v417 = vld [vmem:[%s10 + $0x38] sm:$0xff]
    %v418 = vld [vmem:[%s10 + $0x40] sm:$0xff]
    %v419 = vld [vmem:[%s10 + $0x48] sm:$0xff]
    %v420 = vld [vmem:[%s10 + $0x50] sm:$0xff]
    %v421 = vld [vmem:[%s10 + $0x58] sm:$0xff]
    %422 = vmatprep.subr.mxu0 0.0
    %423 = vmatpush1.msra.mxu0 %v410
    %424 = vmatprep.subr.mxu0 0.0
    %425 = vmatpush1.msra.mxu0 %v411
    %426 = vmatprep.subr.mxu0 0.0
    %427 = vmatpush1.msra.mxu0 %v412
    %428 = vmatprep.subr.mxu0 0.0
    %429 = vmatpush1.msra.mxu0 %v413
    %430 = vmatprep.subr.mxu0 0.0
    %431 = vmatpush1.msra.mxu0 %v414
    %432 = vmatprep.subr.mxu0 0.0
    %433 = vmatpush1.msra.mxu0 %v415
    %434 = vmatprep.subr.mxu0 0.0
    %435 = vmatpush1.msra.mxu0 %v416
    %436 = vmatprep.subr.mxu0 0.0
    %437 = vmatpush1.msra.mxu0 %v417
    %438 = vmatprep.subr.mxu0 0.0
    %439 = vmatpush1.msra.mxu0 %v418
    %440 = vmatprep.subr.mxu0 0.0
    %441 = vmatpush1.msra.mxu0 %v419
    %442 = vmatprep.subr.mxu0 0.0
    %443 = vmatpush1.msra.mxu0 %v420
    %444 = vmatprep.subr.mxu0 0.0
    %445 = vmatpush1.msra.mxu0 %v421
    %446 = vmatprep.subr.mxu0 0.0
    %447 = vmatpush1.msra.mxu0 0.0
    %448 = vmatprep.subr.mxu0 0.0
    %449 = vmatpush1.msra.mxu0 0.0
    %450 = vmatprep.subr.mxu0 0.0
    %451 = vmatpush1.msra.mxu0 0.0
    %452 = vmatprep.subr.mxu0 0.0
    %453 = vmatpush1.msra.mxu0 0.0
    %454 = vmatprep.subr.mxu0 0.0
    %455 = vmatpush1.msra.mxu0 0.0
    %456 = vmatprep.subr.mxu0 0.0
    %457 = vmatpush1.msra.mxu0 0.0
    %458 = vmatprep.subr.mxu0 0.0
    %459 = vmatpush1.msra.mxu0 0.0
    %460 = vmatprep.subr.mxu0 0.0
    %461 = vmatpush1.msra.mxu0 0.0
    %462 = vmatprep.subr.mxu0 0.0
    %463 = vmatpush1.msra.mxu0 0.0
    %464 = vmatprep.subr.mxu0 0.0
    %465 = vmatpush1.msra.mxu0 0.0
    %466 = vmatprep.subr.mxu0 0.0
    %467 = vmatpush1.msra.mxu0 0.0
    %468 = vmatprep.subr.mxu0 0.0
    %469 = vmatpush1.msra.mxu0 0.0
    %470 = vmatprep.subr.mxu0 0.0
    %471 = vmatpush1.msra.mxu0 0.0
    %472 = vmatprep.subr.mxu0 0.0
    %473 = vmatpush1.msra.mxu0 0.0
    %474 = vmatprep.subr.mxu0 0.0
    %475 = vmatpush1.msra.mxu0 0.0
    %476 = vmatprep.subr.mxu0 0.0
    %477 = vmatpush1.msra.mxu0 0.0
    %478 = vmatprep.subr.mxu0 0.0
    %479 = vmatpush1.msra.mxu0 0.0
    %480 = vmatprep.subr.mxu0 0.0
    %481 = vmatpush1.msra.mxu0 0.0
    %482 = vmatprep.subr.mxu0 0.0
    %483 = vmatpush1.msra.mxu0 0.0
    %484 = vmatprep.subr.mxu0 0.0
    %485 = vmatpush1.msra.mxu0 0.0
    %486 = vmatprep.mubr.f32.mxu0 0.0
    %487 = vmatmul.mubr.f32.gmra.mrb[0].mxu0 %v234
    %v488 = vpop.f32.mrb[0].mxu0
    %v489 = vadd.f32 0.0, %v488
    %v490 = vpop.f32.mrb[0].mxu0
    %491 = vdwg.mxu0
    %vm492 = vcmask 523264
    %v494 = vsel %vm492, %v401, 0
    %496 = vmatprep.subr.mxu0 0.0
    %497 = vmatpush1.msra.mxu0 %v402
    %498 = vmatprep.subr.mxu0 0.0
    %499 = vmatpush1.msra.mxu0 %v403
    %500 = vmatprep.subr.mxu0 0.0
    %501 = vmatpush1.msra.mxu0 %v404
    %502 = vmatprep.subr.mxu0 0.0
    %503 = vmatpush1.msra.mxu0 %v405
    %504 = vmatprep.subr.mxu0 0.0
    %505 = vmatpush1.msra.mxu0 %v406
    %506 = vmatprep.subr.mxu0 0.0
    %507 = vmatpush1.msra.mxu0 %v407
    %508 = vmatprep.subr.mxu0 0.0
    %509 = vmatpush1.msra.mxu0 %v408
    %510 = vmatprep.subr.mxu0 0.0
    %511 = vmatpush1.msra.mxu0 %v409
    %512 = vmatprep.subr.mxu0 0.0
    %513 = vmatpush1.msra.mxu0 0.0
    %514 = vmatprep.subr.mxu0 0.0
    %515 = vmatpush1.msra.mxu0 0.0
    %516 = vmatprep.subr.mxu0 0.0
    %517 = vmatpush1.msra.mxu0 0.0
    %518 = vmatprep.subr.mxu0 0.0
    %519 = vmatpush1.msra.mxu0 0.0
    %520 = vmatprep.subr.mxu0 0.0
    %521 = vmatpush1.msra.mxu0 0.0
    %522 = vmatprep.subr.mxu0 0.0
    %523 = vmatpush1.msra.mxu0 0.0
    %524 = vmatprep.subr.mxu0 0.0
    %525 = vmatpush1.msra.mxu0 0.0
    %526 = vmatprep.subr.mxu0 0.0
    %527 = vmatpush1.msra.mxu0 0.0
    %528 = vmatprep.subr.mxu0 0.0
    %529 = vmatpush1.msra.mxu0 0.0
    %530 = vmatprep.subr.mxu0 0.0
    %531 = vmatpush1.msra.mxu0 0.0
    %532 = vmatprep.subr.mxu0 0.0
    %533 = vmatpush1.msra.mxu0 0.0
    %534 = vmatprep.subr.mxu0 0.0
    %535 = vmatpush1.msra.mxu0 0.0
    %536 = vmatprep.subr.mxu0 0.0
    %537 = vmatpush1.msra.mxu0 0.0
    %538 = vmatprep.subr.mxu0 0.0
    %539 = vmatpush1.msra.mxu0 0.0
    %540 = vmatprep.subr.mxu0 0.0
    %541 = vmatpush1.msra.mxu0 0.0
    %542 = vmatprep.subr.mxu0 0.0
    %543 = vmatpush1.msra.mxu0 0.0
    %544 = vmatprep.subr.mxu0 0.0
    %545 = vmatpush1.msra.mxu0 0.0
    %546 = vmatprep.subr.mxu0 0.0
    %547 = vmatpush1.msra.mxu0 0.0
    %548 = vmatprep.subr.mxu0 0.0
    %549 = vmatpush1.msra.mxu0 0.0
    %550 = vmatprep.subr.mxu0 0.0
    %551 = vmatpush1.msra.mxu0 0.0
    %552 = vmatprep.subr.mxu0 0.0
    %553 = vmatpush1.msra.mxu0 0.0
    %554 = vmatprep.subr.mxu0 0.0
    %555 = vmatpush1.msra.mxu0 0.0
    %556 = vmatprep.subr.mxu0 0.0
    %557 = vmatpush1.msra.mxu0 0.0
    %558 = vmatprep.subr.mxu0 0.0
    %559 = vmatpush1.msra.mxu0 0.0
    %560 = vmatprep.mubr.f32.mxu0 0.0
    %561 = vmatmul.mubr.f32.gmra.mrb[0].mxu0 %v494
    %v562 = vpop.f32.mrb[0].mxu0
    %v563 = vadd.f32 %v489, %v562
    %v564 = vpop.f32.mrb[0].mxu0
    %565 = vdwg.mxu0
    %v566 = vmul.f32 %v563, 0.01
    %v567 = vmax.f32 %v563, %v566
    %vm568 = vcmask 130048
    %569 = vst.msk [vmem:[#allocation2] sm:$0xff] %vm568, %v567
    // Predicated region
    $region46: #{tpu_custom_call.1} parent=1 // pred_check
      _
    $region47: #{tpu_custom_call.1} parent=1 // pred_check_branch
      %571 = sbr.rel (0) target = $region49
    $region48: #{tpu_custom_call.1} parent=1 // pred_region
      %s573 = ssub.s32 128, 128
      %574 = vsyncadd [#allocation3], %s573
      %s576 = sshll.u32 [#allocation2], 4
      %s577 = int_to_ptr.vmem [resolvable:$true] %s576
      %579 = dma.vmem_to_hbm [thread:$0]  %s577, 128, %s11, [#allocation3]
    $region49: #{tpu_custom_call.1} parent=1 // pred_fallthru
      _
    // Predicated region
    $region50: #{tpu_custom_call.1} parent=1 // pred_check
      _
    $region51: #{tpu_custom_call.1} parent=1 // pred_check_branch
      %581 = sbr.rel (0) target = $region53
    $region52: #{tpu_custom_call.1} parent=1 // pred_region
      %582 = dma.done [#allocation3], 128
    $region53: #{tpu_custom_call.1} parent=1 // pred_fallthru
      _
    %583 = vsyncpa [#allocation3], 1

</llo_original>
